<compile_context>
chip_gen: v5e
topology: v5e:2x2
jax: 0.10.0
libtpu: 0.0.40
codegen_flags: <defaults>
</compile_context>

<pallas_src>
import math

import jax
import jax.numpy as jnp
from jax.experimental import pallas as pl
from jax.experimental.pallas import tpu as pltpu

MAX_BATCH_TILE = 4096   # rows of x per grid step (sweepable by callers)


def _round_up(n, m):
    return ((n + m - 1) // m) * m


def _cdiv(a, b):
    return -(-a // b)


def _choose_tiling(B, batch_tile):
    """Pick (tile_rows, padded_batch, grid) with minimal padding.

    - tile is always a multiple of 8 (sublane constraint), even for
      user-supplied batch_tile values.
    - when B >= 16 we force >= 2 grid steps so v7x's two TensorCores both get
      work through the "parallel" batch axis.
    - padding is at most ~8 rows per grid step (never "round B up to the tile").
    """
    batch_tile = max(8, _round_up(int(batch_tile), 8))
    n_steps = max(1, _cdiv(B, batch_tile))
    if B >= 16:
        n_steps = max(n_steps, 2)
    tb = min(batch_tile, _round_up(_cdiv(B, n_steps), 8))
    B_pad = _round_up(B, tb)
    return tb, B_pad, (B_pad // tb,)


def mlp_kernel(x_ref, w1_ref, b1_ref, w2_ref, b2_ref, w3_ref, b3_ref, o_ref):
    x = x_ref[...]                                                       # (tb, D_in)

    # dense1 + relu  (MXU matmul, f32 accumulate; epilogue in f32 -> v5e-safe)
    h1 = jnp.dot(x, w1_ref[...], preferred_element_type=jnp.float32)    # (tb, 30)
    h1 = jnp.maximum(h1 + b1_ref[...], 0.0).astype(w2_ref.dtype)

    # dense2 + relu
    h2 = jnp.dot(h1, w2_ref[...], preferred_element_type=jnp.float32)   # (tb, 20)
    h2 = jnp.maximum(h2 + b2_ref[...], 0.0).astype(w3_ref.dtype)

    # dense3 (no activation) -> narrow (tb, 10) output block
    out = jnp.dot(h2, w3_ref[...], preferred_element_type=jnp.float32)  # (tb, 10)
    o_ref[...] = (out + b3_ref[...]).astype(o_ref.dtype)


def network_forward(x, params, *, batch_tile=MAX_BATCH_TILE,
                    compute_dtype=jnp.float32):
    """x: (B, D_in); params: dict of weights (in,out) / biases (1,out).

    compute_dtype=jnp.bfloat16 halves x read traffic (recommended on v6e/v7x
    when strict f32 parity is not required); accumulation is always f32.
    """
    w1, b1 = params["w1"], params["b1"]
    w2, b2 = params["w2"], params["b2"]
    w3, b3 = params["w3"], params["b3"]

    B, d_in = x.shape
    n_out = w3.shape[1]

    # Boundary casts.  Weights are tiny; ideally callers hoist these casts into
    # params preprocessing so they are not re-emitted per call (negligible here).
    xc = x.astype(compute_dtype)
    w1c = w1.astype(compute_dtype)
    w2c = w2.astype(compute_dtype)
    w3c = w3.astype(compute_dtype)
    b1f = b1.astype(jnp.float32)
    b2f = b2.astype(jnp.float32)
    b3f = b3.astype(jnp.float32)

    tb, B_pad, grid = _choose_tiling(B, batch_tile)
    if B_pad != B:
        xc = jnp.pad(xc, ((0, B_pad - B), (0, 0)))      # at most a few rows

    # Weights/biases stay VMEM-resident: constant block index across the grid.
    const = lambda a: pl.BlockSpec(a.shape, lambda i, _nd=a.ndim: (0,) * _nd)

    x_item = jnp.dtype(compute_dtype).itemsize
    flops = 2 * B_pad * (d_in * w1.shape[1]
                         + w2.shape[0] * w2.shape[1]
                         + w3.shape[0] * w3.shape[1])
    bytes_accessed = (B_pad * d_in * x_item                              # x
                      + (w1.size + w2.size + w3.size) * x_item          # weights
                      + (b1.size + b2.size + b3.size) * 4               # biases
                      + B_pad * n_out * 4)                              # output

    out = pl.pallas_call(
        mlp_kernel,
        out_shape=jax.ShapeDtypeStruct((B_pad, n_out), jnp.float32),
        grid=grid,
        in_specs=[
            pl.BlockSpec((tb, d_in), lambda i: (i, 0)),   # x: streamed per tile
            const(w1c), const(b1f),
            const(w2c), const(b2f),
            const(w3c), const(b3f),
        ],
        out_specs=pl.BlockSpec((tb, n_out), lambda i: (i, 0)),
        compiler_params=pltpu.CompilerParams(
            dimension_semantics=("parallel",)),           # v7x: batch over 2 TCs
        cost_estimate=pl.CostEstimate(
            flops=flops, transcendentals=0, bytes_accessed=bytes_accessed),
    )(xc, w1c, b1f, w2c, b2f, w3c, b3f)

    return out[:B] if B_pad != B else out


def init_params(history_length, key):
    """Deterministic init mirroring nn.Linear's default uniform(-1/sqrt(fan_in))."""
    d_in = 10 * (history_length + 1) + 3 * history_length
    dims = [(d_in, 30), (30, 20), (20, 10)]
    params = {}
    keys = jax.random.split(key, 2 * len(dims))
    for i, (fan_in, fan_out) in enumerate(dims):
        bound = 1.0 / math.sqrt(fan_in)
        w = jax.random.uniform(keys[2 * i], (fan_in, fan_out),
                               minval=-bound, maxval=bound, dtype=jnp.float32)
        b = jax.random.uniform(keys[2 * i + 1], (1, fan_out),
                               minval=-bound, maxval=bound, dtype=jnp.float32)
        params[f"w{i + 1}"] = w
        params[f"b{i + 1}"] = b
    return params, d_in


def reference_forward(x, p):
    h1 = jnp.maximum(x @ p["w1"] + p["b1"], 0.0)
    h2 = jnp.maximum(h1 @ p["w2"] + p["b2"], 0.0)
    return h2 @ p["w3"] + p["b3"]


if __name__ == "__main__":
    history_length = 2                       # -> input dim = 10*3 + 3*2 = 36

    key = jax.random.PRNGKey(0)
    k_params, k_small, k_big, k_rag = jax.random.split(key, 4)
    params, d_in = init_params(history_length, k_params)

    # Small-shape check (single grid step, batch padded only to 8 rows).
    x_small = jax.random.normal(k_small, (4, d_in), dtype=jnp.float32)
    out_small = jax.block_until_ready(network_forward(x_small, params))
    ref_small = reference_forward(x_small, params)
    assert out_small.shape == (4, 10)
    assert jnp.allclose(out_small, ref_small, atol=1e-5, rtol=1e-5), \
        "small-batch mismatch vs reference"

    # Multi-tile check: 1536 rows -> 2 grid steps of 768 (both TCs busy on v7x).
    x_big = jax.random.normal(k_big, (1536, d_in), dtype=jnp.float32)
    out_big = jax.block_until_ready(network_forward(x_big, params))
    ref_big = reference_forward(x_big, params)
    assert out_big.shape == (1536, 10)
    assert jnp.allclose(out_big, ref_big, atol=1e-5, rtol=1e-5), \
        "batched mismatch vs reference"

    # Ragged batch check: 600 rows -> tile 304, 2 grid steps, 8 rows of padding.
    x_rag = jax.random.normal(k_rag, (600, d_in), dtype=jnp.float32)
    out_rag = jax.block_until_ready(network_forward(x_rag, params))
    ref_rag = reference_forward(x_rag, params)
    assert out_rag.shape == (600, 10)
    assert jnp.allclose(out_rag, ref_rag, atol=1e-5, rtol=1e-5), \
        "ragged-batch mismatch vs reference"

    # bf16 boundary-cast path (v6e/v7x traffic optimization); f32 accumulation.
    out_bf16 = jax.block_until_ready(
        network_forward(x_big, params, compute_dtype=jnp.bfloat16))
    assert out_bf16.shape == (1536, 10)
    assert jnp.allclose(out_bf16, ref_big, atol=5e-2, rtol=5e-2), \
        "bf16-path mismatch vs reference"

    print("KERNEL_OK")
</pallas_src>

<mosaic_0001>
module attributes {stable_mosaic.version = 11 : i64} {
  func.func @mlp_kernel(%arg0: i32, %arg1: memref<8x36xf32, #tpu.memory_space<vmem>>, %arg2: memref<36x30xf32, #tpu.memory_space<vmem>>, %arg3: memref<1x30xf32, #tpu.memory_space<vmem>>, %arg4: memref<30x20xf32, #tpu.memory_space<vmem>>, %arg5: memref<1x20xf32, #tpu.memory_space<vmem>>, %arg6: memref<20x10xf32, #tpu.memory_space<vmem>>, %arg7: memref<1x10xf32, #tpu.memory_space<vmem>>, %arg8: memref<8x10xf32, #tpu.memory_space<vmem>>) attributes {dimension_semantics = [#tpu.dimension_semantics<parallel>], iteration_bounds = array<i64: 1>, scalar_prefetch = 0 : i64, scratch_operands = 0 : i64, tpu.core_type = #tpu.core_type<tc>, window_params = [{transform_indices = @transform_0, window_bounds = array<i64: 8, 36>}, {pipeline_mode = #tpu.pipeline_mode<synchronous>, transform_indices = @transform_1, window_bounds = array<i64: 36, 30>}, {pipeline_mode = #tpu.pipeline_mode<synchronous>, transform_indices = @transform_2, window_bounds = array<i64: 1, 30>}, {pipeline_mode = #tpu.pipeline_mode<synchronous>, transform_indices = @transform_3, window_bounds = array<i64: 30, 20>}, {pipeline_mode = #tpu.pipeline_mode<synchronous>, transform_indices = @transform_4, window_bounds = array<i64: 1, 20>}, {pipeline_mode = #tpu.pipeline_mode<synchronous>, transform_indices = @transform_5, window_bounds = array<i64: 20, 10>}, {pipeline_mode = #tpu.pipeline_mode<synchronous>, transform_indices = @transform_6, window_bounds = array<i64: 1, 10>}, {transform_indices = @transform_7, window_bounds = array<i64: 8, 10>}]} {
    %c0 = arith.constant 0 : index
    %c0_0 = arith.constant 0 : index
    %0 = vector.load %arg1[%c0, %c0_0] : memref<8x36xf32, #tpu.memory_space<vmem>>, vector<8x36xf32>
    %c0_1 = arith.constant 0 : index
    %c0_2 = arith.constant 0 : index
    %1 = vector.load %arg2[%c0_1, %c0_2] : memref<36x30xf32, #tpu.memory_space<vmem>>, vector<36x30xf32>
    %cst = arith.constant dense<0.000000e+00> : vector<8x30xf32>
    %2 = tpu.matmul %0, %1, %cst {dimension_numbers = #tpu.dot_dimension_numbers<[1], [0], [0], [1], [0, 0, 1, 1], [], []>} : vector<8x36xf32>, vector<36x30xf32>, vector<8x30xf32> -> vector<8x30xf32>
    %c0_3 = arith.constant 0 : index
    %c0_4 = arith.constant 0 : index
    %3 = vector.load %arg3[%c0_3, %c0_4] : memref<1x30xf32, #tpu.memory_space<vmem>>, vector<1x30xf32>
    %4 = vector.broadcast %3 : vector<1x30xf32> to vector<8x30xf32>
    %5 = arith.addf %2, %4 : vector<8x30xf32>
    %cst_5 = arith.constant 0.000000e+00 : f32
    %6 = vector.broadcast %cst_5 : f32 to vector<8x30xf32>
    %7 = arith.maximumf %5, %6 : vector<8x30xf32>
    %c0_6 = arith.constant 0 : index
    %c0_7 = arith.constant 0 : index
    %8 = vector.load %arg4[%c0_6, %c0_7] : memref<30x20xf32, #tpu.memory_space<vmem>>, vector<30x20xf32>
    %cst_8 = arith.constant dense<0.000000e+00> : vector<8x20xf32>
    %9 = tpu.matmul %7, %8, %cst_8 {dimension_numbers = #tpu.dot_dimension_numbers<[1], [0], [0], [1], [0, 0, 1, 1], [], []>} : vector<8x30xf32>, vector<30x20xf32>, vector<8x20xf32> -> vector<8x20xf32>
    %c0_9 = arith.constant 0 : index
    %c0_10 = arith.constant 0 : index
    %10 = vector.load %arg5[%c0_9, %c0_10] : memref<1x20xf32, #tpu.memory_space<vmem>>, vector<1x20xf32>
    %11 = vector.broadcast %10 : vector<1x20xf32> to vector<8x20xf32>
    %12 = arith.addf %9, %11 : vector<8x20xf32>
    %cst_11 = arith.constant 0.000000e+00 : f32
    %13 = vector.broadcast %cst_11 : f32 to vector<8x20xf32>
    %14 = arith.maximumf %12, %13 : vector<8x20xf32>
    %c0_12 = arith.constant 0 : index
    %c0_13 = arith.constant 0 : index
    %15 = vector.load %arg6[%c0_12, %c0_13] : memref<20x10xf32, #tpu.memory_space<vmem>>, vector<20x10xf32>
    %cst_14 = arith.constant dense<0.000000e+00> : vector<8x10xf32>
    %16 = tpu.matmul %14, %15, %cst_14 {dimension_numbers = #tpu.dot_dimension_numbers<[1], [0], [0], [1], [0, 0, 1, 1], [], []>} : vector<8x20xf32>, vector<20x10xf32>, vector<8x10xf32> -> vector<8x10xf32>
    %c0_15 = arith.constant 0 : index
    %c0_16 = arith.constant 0 : index
    %17 = vector.load %arg7[%c0_15, %c0_16] : memref<1x10xf32, #tpu.memory_space<vmem>>, vector<1x10xf32>
    %18 = vector.broadcast %17 : vector<1x10xf32> to vector<8x10xf32>
    %19 = arith.addf %16, %18 : vector<8x10xf32>
    %c0_17 = arith.constant 0 : index
    %c0_18 = arith.constant 0 : index
    %20 = vector.load %arg8[%c0_17, %c0_18] : memref<8x10xf32, #tpu.memory_space<vmem>>, vector<8x10xf32>
    tpu.vector_store %arg8[%c0_17, %c0_18], %19 {strides = array<i32>} : memref<8x10xf32, #tpu.memory_space<vmem>>, vector<8x10xf32>,
    return
  }
  func.func @transform_0(%arg0: i32) -> (i32, i32) {
    %c0_i32 = arith.constant 0 : i32
    %c0_i32_0 = arith.constant 0 : i32
    return %arg0, %c0_i32 : i32, i32
  }
  func.func @transform_1(%arg0: i32) -> (i32, i32) {
    %c0_i32 = arith.constant 0 : i32
    %c0_i32_0 = arith.constant 0 : i32
    %c0_i32_1 = arith.constant 0 : i32
    return %c0_i32, %c0_i32_0 : i32, i32
  }
  func.func @transform_2(%arg0: i32) -> (i32, i32) {
    %c0_i32 = arith.constant 0 : i32
    %c0_i32_0 = arith.constant 0 : i32
    %c0_i32_1 = arith.constant 0 : i32
    return %c0_i32, %c0_i32_0 : i32, i32
  }
  func.func @transform_3(%arg0: i32) -> (i32, i32) {
    %c0_i32 = arith.constant 0 : i32
    %c0_i32_0 = arith.constant 0 : i32
    %c0_i32_1 = arith.constant 0 : i32
    return %c0_i32, %c0_i32_0 : i32, i32
  }
  func.func @transform_4(%arg0: i32) -> (i32, i32) {
    %c0_i32 = arith.constant 0 : i32
    %c0_i32_0 = arith.constant 0 : i32
    %c0_i32_1 = arith.constant 0 : i32
    return %c0_i32, %c0_i32_0 : i32, i32
  }
  func.func @transform_5(%arg0: i32) -> (i32, i32) {
    %c0_i32 = arith.constant 0 : i32
    %c0_i32_0 = arith.constant 0 : i32
    %c0_i32_1 = arith.constant 0 : i32
    return %c0_i32, %c0_i32_0 : i32, i32
  }
  func.func @transform_6(%arg0: i32) -> (i32, i32) {
    %c0_i32 = arith.constant 0 : i32
    %c0_i32_0 = arith.constant 0 : i32
    %c0_i32_1 = arith.constant 0 : i32
    return %c0_i32, %c0_i32_0 : i32, i32
  }
  func.func @transform_7(%arg0: i32) -> (i32, i32) {
    %c0_i32 = arith.constant 0 : i32
    %c0_i32_0 = arith.constant 0 : i32
    return %arg0, %c0_i32 : i32, i32
  }
}

</mosaic_0001>

<llo_original>
// kernel: tpu_custom_call.1
$region0: #{tpu_custom_call.1}
  #allocation0 [shape = 'u32[]', space=smem, size = 0x4, offset = 0x4, fixed_abs, tag = 'smem constant byte address 0x4 - core index']
  #allocation1 [shape = 'u32[72,128]{1,0:T(1,128)}', space=vmem, size = 0x9000, scoped, tag = 'internal scratch']
  %s0 = inlined_call_operand.vmem [shape: f32[8,36], index: 0, kind: input, shape index: {}]
  %s1 = inlined_call_operand.vmem [shape: f32[36,30], index: 1, kind: input, shape index: {}]
  %s2 = inlined_call_operand.vmem [shape: f32[1,30], index: 2, kind: input, shape index: {}]
  %s3 = inlined_call_operand.vmem [shape: f32[30,20], index: 3, kind: input, shape index: {}]
  %s4 = inlined_call_operand.vmem [shape: f32[1,20], index: 4, kind: input, shape index: {}]
  %s5 = inlined_call_operand.vmem [shape: f32[20,10], index: 5, kind: input, shape index: {}]
  %s6 = inlined_call_operand.vmem [shape: f32[1,10], index: 6, kind: input, shape index: {}]
  %s7 = inlined_call_operand.hbm [shape: f32[8,10], index: 7, kind: output, shape index: {}]
  %s8 = sld [smem:[#allocation0]]
  $region38: #{tpu_custom_call.1} parent=0
    _
  %s10 = ssub.s32 1, %s8
  %s11 = scalar_select 0, %s10, %s8
  $region1: #{tpu_custom_call.1} parent=0
    #allocation2 [shape = 'u8[4096]{0}', space=vmem, size = 0x1000, scoped, tag = 'output window, operand 0, single buffered']
    #allocation3 [shape = 's32[1]{0}', space=sflag, size = 0x4, scoped, tag = 'scoped memory for tpu_custom_call.1']
    %12 = vsyncpa [#allocation3], 0
    // Predicated region
    $region2: #{tpu_custom_call.1} parent=1 // pred_check
      _
    $region3: #{tpu_custom_call.1} parent=1 // pred_check_branch
      %14 = sbr.rel (0) target = $region5
    $region4: #{tpu_custom_call.1} parent=1 // pred_region
      _
    $region5: #{tpu_custom_call.1} parent=1 // pred_fallthru
      _
    // Predicated region
    $region6: #{tpu_custom_call.1} parent=1 // pred_check
      _
    $region7: #{tpu_custom_call.1} parent=1 // pred_check_branch
      %16 = sbr.rel (0) target = $region9
    $region8: #{tpu_custom_call.1} parent=1 // pred_region
      _
    $region9: #{tpu_custom_call.1} parent=1 // pred_fallthru
      _
    // Predicated region
    $region10: #{tpu_custom_call.1} parent=1 // pred_check
      _
    $region11: #{tpu_custom_call.1} parent=1 // pred_check_branch
      %18 = sbr.rel (0) target = $region13
    $region12: #{tpu_custom_call.1} parent=1 // pred_region
      _
    $region13: #{tpu_custom_call.1} parent=1 // pred_fallthru
      _
    // Predicated region
    $region14: #{tpu_custom_call.1} parent=1 // pred_check
      _
    $region15: #{tpu_custom_call.1} parent=1 // pred_check_branch
      %20 = sbr.rel (0) target = $region17
    $region16: #{tpu_custom_call.1} parent=1 // pred_region
      _
    $region17: #{tpu_custom_call.1} parent=1 // pred_fallthru
      _
    // Predicated region
    $region18: #{tpu_custom_call.1} parent=1 // pred_check
      _
    $region19: #{tpu_custom_call.1} parent=1 // pred_check_branch
      %22 = sbr.rel (0) target = $region21
    $region20: #{tpu_custom_call.1} parent=1 // pred_region
      _
    $region21: #{tpu_custom_call.1} parent=1 // pred_fallthru
      _
    // Predicated region
    $region22: #{tpu_custom_call.1} parent=1 // pred_check
      _
    $region23: #{tpu_custom_call.1} parent=1 // pred_check_branch
      %24 = sbr.rel (0) target = $region25
    $region24: #{tpu_custom_call.1} parent=1 // pred_region
      _
    $region25: #{tpu_custom_call.1} parent=1 // pred_fallthru
      _
    // Predicated region
    $region26: #{tpu_custom_call.1} parent=1 // pred_check
      _
    $region27: #{tpu_custom_call.1} parent=1 // pred_check_branch
      %26 = sbr.rel (0) target = $region29
    $region28: #{tpu_custom_call.1} parent=1 // pred_region
      _
    $region29: #{tpu_custom_call.1} parent=1 // pred_fallthru
      _
    %v27 = vld [vmem:[%s0] sm:$0xff]
    %v28 = vld [vmem:[%s1] sm:$0xff]
    %v29 = vld [vmem:[%s1 + $0x8] sm:$0xff]
    %v30 = vld [vmem:[%s1 + $0x10] sm:$0xff]
    %v31 = vld [vmem:[%s1 + $0x18] sm:$0xff]
    %v32 = vld [vmem:[%s1 + $0x20] sm:$0xf]
    %v33 = vld [vmem:[%s2] sm:$0x1]
    %v35 = vperm.slane %v33, 0
    %vm37 = vcmask 293888
    %v39 = vsel %vm37, %v27, 0
    %vm41 = vcmask 1043456
    %v43 = vsel %vm41, %v32, 0
    %45 = vmatpush.msra.mxu0 0.0
    %46 = vmatpush.msra.mxu0 0.0
    %47 = vmatpush.msra.mxu0 0.0
    %48 = vmatpush.msra.mxu0 0.0
    %49 = vmatpush.msra.mxu0 0.0
    %50 = vmatpush.msra.mxu0 0.0
    %51 = vmatpush.msra.mxu0 0.0
    %52 = vmatpush.msra.mxu0 0.0
    %53 = vmatpush.msra.mxu0 0.0
    %54 = vmatpush.msra.mxu0 0.0
    %55 = vmatpush.msra.mxu0 0.0
    %56 = vmatpush.msra.mxu0 %v43
    %57 = vmatpush.msra.mxu0 %v31
    %58 = vmatpush.msra.mxu0 %v30
    %59 = vmatpush.msra.mxu0 %v29
    %60 = vmatpush.msra.mxu0 %v28
    %61 = vmatmul.f32.gmra.mxu0 %v39
    %v62 = vpop.f32.mrf.mxu0
    %v63 = vadd.f32 %v35, %v62
    %64 = vdwg.mxu0
    %v65 = vmax.f32 %v63, 0.0
    %v66 = vld [vmem:[%s3] sm:$0xff]
    %v67 = vld [vmem:[%s3 + $0x8] sm:$0xff]
    %v68 = vld [vmem:[%s3 + $0x10] sm:$0xff]
    %v69 = vld [vmem:[%s3 + $0x18] sm:$0x3f]
    %v70 = vld [vmem:[%s4] sm:$0x1]
    %v72 = vperm.slane %v70, 0
    %vm74 = vcmask 244736
    %v76 = vsel %vm74, %v65, 0
    %vm78 = vcmask 1045504
    %v80 = vsel %vm78, %v69, 0
    %82 = vmatpush.msra.mxu0 0.0
    %83 = vmatpush.msra.mxu0 0.0
    %84 = vmatpush.msra.mxu0 0.0
    %85 = vmatpush.msra.mxu0 0.0
    %86 = vmatpush.msra.mxu0 0.0
    %87 = vmatpush.msra.mxu0 0.0
    %88 = vmatpush.msra.mxu0 0.0
    %89 = vmatpush.msra.mxu0 0.0
    %90 = vmatpush.msra.mxu0 0.0
    %91 = vmatpush.msra.mxu0 0.0
    %92 = vmatpush.msra.mxu0 0.0
    %93 = vmatpush.msra.mxu0 0.0
    %94 = vmatpush.msra.mxu0 %v80
    %95 = vmatpush.msra.mxu0 %v68
    %96 = vmatpush.msra.mxu0 %v67
    %97 = vmatpush.msra.mxu0 %v66
    %98 = vmatmul.f32.gmra.mxu0 %v76
    %v99 = vpop.f32.mrf.mxu0
    %v100 = vadd.f32 %v72, %v99
    %101 = vdwg.mxu0
    %v102 = vmax.f32 %v100, 0.0
    %v103 = vld [vmem:[%s5] sm:$0xff]
    %v104 = vld [vmem:[%s5 + $0x8] sm:$0xff]
    %v105 = vld [vmem:[%s5 + $0x10] sm:$0xf]
    %v106 = vld [vmem:[%s6] sm:$0x1]
    %v108 = vperm.slane %v106, 0
    %vm110 = vcmask 162816
    %v112 = vsel %vm110, %v102, 0
    %v115 = vsel %vm41, %v105, 0
    %117 = vmatpush.msra.mxu0 0.0
    %118 = vmatpush.msra.mxu0 0.0
    %119 = vmatpush.msra.mxu0 0.0
    %120 = vmatpush.msra.mxu0 0.0
    %121 = vmatpush.msra.mxu0 0.0
    %122 = vmatpush.msra.mxu0 0.0
    %123 = vmatpush.msra.mxu0 0.0
    %124 = vmatpush.msra.mxu0 0.0
    %125 = vmatpush.msra.mxu0 0.0
    %126 = vmatpush.msra.mxu0 0.0
    %127 = vmatpush.msra.mxu0 0.0
    %128 = vmatpush.msra.mxu0 0.0
    %129 = vmatpush.msra.mxu0 0.0
    %130 = vmatpush.msra.mxu0 %v115
    %131 = vmatpush.msra.mxu0 %v104
    %132 = vmatpush.msra.mxu0 %v103
    %133 = vmatmul.f32.gmra.mxu0 %v112
    %v134 = vpop.f32.mrf.mxu0
    %v135 = vadd.f32 %v108, %v134
    %136 = vdwg.mxu0
    %vm137 = vcmask 80896
    %138 = vst.msk [vmem:[#allocation2] sm:$0xff] %vm137, %v135
    // Predicated region
    $region30: #{tpu_custom_call.1} parent=1 // pred_check
      _
    $region31: #{tpu_custom_call.1} parent=1 // pred_check_branch
      %140 = sbr.rel (0) target = $region33
    $region32: #{tpu_custom_call.1} parent=1 // pred_region
      %142 = vsyncadd [#allocation3], 0
      %s144 = sshll.u32 [#allocation2], 4
      %s145 = int_to_ptr.vmem [resolvable:$true] %s144
      %s146 = sshll.u32 %s7, 4
      %s147 = int_to_ptr.hbm [resolvable:$true] %s146
      %149 = dma.vmem_to_hbm [thread:$0]  %s145, 128, %s147, [#allocation3]
    $region33: #{tpu_custom_call.1} parent=1 // pred_fallthru
      _
    // Predicated region
    $region34: #{tpu_custom_call.1} parent=1 // pred_check
      _
    $region35: #{tpu_custom_call.1} parent=1 // pred_check_branch
      %151 = sbr.rel (0) target = $region37
    $region36: #{tpu_custom_call.1} parent=1 // pred_region
      %153 = dma.done [#allocation3], 128
    $region37: #{tpu_custom_call.1} parent=1 // pred_fallthru
      _
    %154 = vsyncpa [#allocation3], 1

</llo_original>
